<compile_context>
chip_gen: v7x
topology: tpu7x:2x2x1
jax: 0.10.0
libtpu: 0.0.40
codegen_flags: <defaults>
</compile_context>

<pallas_src>
import math

import jax
import jax.numpy as jnp
from jax.experimental import pallas as pl
from jax.experimental.pallas import tpu as pltpu


def _round_up(x, m):
    return ((x + m - 1) // m) * m


def fcnet_kernel(x_ref, w_in_ref, b_in_ref, w1_ref, b1_ref, w2_ref, b2_ref,
                 w_out_ref, b_out_ref, o_ref):
    """One batch tile of the FCNet forward.

    x_ref:     [TB, A]        (param_dtype, e.g. bf16)
    w_in_ref:  [A, L]         b_in_ref:  [1, L]        (biases f32)
    w1_ref:    [n_res, L, L]  b1_ref:    [n_res, 1, L]
    w2_ref:    [n_res, L, L]  b2_ref:    [n_res, 1, L]
    w_out_ref: [L, N]         b_out_ref: [1, N]
    o_ref:     [TB, N]        (f32)
    """
    n_res = w1_ref.shape[0]
    w_dtype = w_in_ref.dtype

    # Input Linear: actions -> layer (f32 accumulation on the MXU).
    h = jnp.dot(x_ref[...], w_in_ref[...], preferred_element_type=jnp.float32)
    h = h + b_in_ref[...]                                        # [TB, L] f32

    # Residual blocks; serially data-dependent through h.  Unrolled so the
    # scheduler can prefetch the next block's (tiny) weights from VMEM early.
    def res_body(r, h):
        t = jnp.maximum(h, 0.0)
        t = jnp.dot(t.astype(w_dtype), w1_ref[r],
                    preferred_element_type=jnp.float32) + b1_ref[r]
        t = jnp.maximum(t, 0.0)
        t = jnp.dot(t.astype(w_dtype), w2_ref[r],
                    preferred_element_type=jnp.float32) + b2_ref[r]
        return h + t

    h = jax.lax.fori_loop(0, n_res, res_body, h, unroll=True)

    # Final ReLU + output Linear: layer -> n.
    h = jnp.maximum(h, 0.0)
    out = jnp.dot(h.astype(w_dtype), w_out_ref[...],
                  preferred_element_type=jnp.float32)
    o_ref[...] = (out + b_out_ref[...]).astype(o_ref.dtype)


def fcnet_forward(x, w_in, b_in, w1, b1, w2, b2, w_out, b_out,
                  param_dtype=jnp.bfloat16):
    """FCNet forward.

    x:     [B, actions]
    w_in:  [actions, layer]   b_in:  [layer]
    w1,w2: [n_res, layer, layer]   b1,b2: [n_res, layer]
    w_out: [layer, n]         b_out: [n]
    Returns [B, n] f32, squeezed to [B] if n == 1 (mirrors x.squeeze_(1)).
    """
    B, A = x.shape
    L = w_in.shape[1]
    n_res = w1.shape[0]
    N = w_out.shape[1]

    # Batch tiling only; feature dims stay at their natural sizes.
    TB = min(256, _round_up(B, 8))
    B_pad = _round_up(B, TB)
    grid = (B_pad // TB,)

    # Matmul operands in param_dtype (bf16 default); biases stay f32.
    # TODO(synk): in a real model these casts/reshapes would be hoisted into
    # one-time parameter prep instead of being re-issued per forward call.
    xw = x.astype(param_dtype)
    if B_pad != B:
        xw = jnp.pad(xw, ((0, B_pad - B), (0, 0)))
    w_in_c = w_in.astype(param_dtype)
    w1_c = w1.astype(param_dtype)
    w2_c = w2.astype(param_dtype)
    w_out_c = w_out.astype(param_dtype)
    b_in_2d = b_in.astype(jnp.float32).reshape(1, L)
    b1_3d = b1.astype(jnp.float32).reshape(n_res, 1, L)
    b2_3d = b2.astype(jnp.float32).reshape(n_res, 1, L)
    b_out_2d = b_out.astype(jnp.float32).reshape(1, N)

    # VMEM budget: resident weights + double-buffered x/out tiles + f32
    # activations.  Cap well below v7x's 64 MiB per-TC VMEM.
    itm = jnp.dtype(param_dtype).itemsize
    weight_bytes = (A * L + 2 * n_res * L * L + L * N) * itm \
                   + (L * (2 * n_res + 1) + N) * 4
    tile_bytes = TB * A * itm + TB * N * 4
    vmem_est = 2 * (weight_bytes + tile_bytes) + 4 * TB * L
    vmem_limit = int(min(max(4 * vmem_est, 16 << 20), 48 << 20))
    # TODO(synk): if resident weights ever exceed this budget (huge layer /
    # n_res), stream the res-block weights over a second grid axis instead.

    const2 = lambda i: (0, 0)
    const3 = lambda i: (0, 0, 0)

    out = pl.pallas_call(
        fcnet_kernel,
        out_shape=jax.ShapeDtypeStruct((B_pad, N), jnp.float32),
        grid=grid,
        in_specs=[
            pl.BlockSpec((TB, A), lambda i: (i, 0)),        # x tile (pipelined)
            pl.BlockSpec((A, L), const2),                   # w_in   (resident)
            pl.BlockSpec((1, L), const2),                   # b_in
            pl.BlockSpec((n_res, L, L), const3),            # w1
            pl.BlockSpec((n_res, 1, L), const3),            # b1
            pl.BlockSpec((n_res, L, L), const3),            # w2
            pl.BlockSpec((n_res, 1, L), const3),            # b2
            pl.BlockSpec((L, N), const2),                   # w_out
            pl.BlockSpec((1, N), const2),                   # b_out
        ],
        out_specs=pl.BlockSpec((TB, N), lambda i: (i, 0)),  # [TB, n] (n==1 ok)
        compiler_params=pltpu.CompilerParams(
            dimension_semantics=("parallel",),              # megacore on v7x
            vmem_limit_bytes=vmem_limit),
    )(xw, w_in_c, b_in_2d, w1_c, b1_3d, w2_c, b2_3d, w_out_c, b_out_2d)

    out = out[:B]
    if N == 1:
        out = out[:, 0]
    return out


def fcnet_ref(x, w_in, b_in, w1, b1, w2, b2, w_out, b_out):
    """Pure-JAX f32 reference mirroring the PyTorch FCNet forward."""
    h = x @ w_in + b_in
    for r in range(w1.shape[0]):
        t = jnp.maximum(h, 0.0)
        t = t @ w1[r] + b1[r]
        t = jnp.maximum(t, 0.0)
        t = t @ w2[r] + b2[r]
        h = h + t
    h = jnp.maximum(h, 0.0)
    out = h @ w_out + b_out
    if w_out.shape[1] == 1:
        out = out[:, 0]
    return out


if __name__ == "__main__":
    # Small shapes consistent with FCNet(actions, layer, n=1, n_res); x is [batch, actions].
    batch, actions, layer, n_out, n_res = 8, 4, 32, 1, 3

    key = jax.random.PRNGKey(0)
    kx, k1, k2, k3, k4, k5, k6, k7, k8 = jax.random.split(key, 9)

    # Deterministic synthetic params (forward semantics only; the orthogonal
    # init is a host-side initialization detail, not part of the forward).
    # Weights generated directly in [in, out] form.
    x = jax.random.normal(kx, (batch, actions), dtype=jnp.float32)
    b_a = 1.0 / math.sqrt(actions)
    b_l = 1.0 / math.sqrt(layer)
    w_in = jax.random.uniform(k1, (actions, layer), jnp.float32, -b_a, b_a)
    b_in = jax.random.uniform(k2, (layer,), jnp.float32, -b_a, b_a)
    w1 = jax.random.uniform(k3, (n_res, layer, layer), jnp.float32, -b_l, b_l)
    b1 = jax.random.uniform(k4, (n_res, layer), jnp.float32, -b_l, b_l)
    w2 = jax.random.uniform(k5, (n_res, layer, layer), jnp.float32, -b_l, b_l)
    b2 = jax.random.uniform(k6, (n_res, layer), jnp.float32, -b_l, b_l)
    w_out = jax.random.uniform(k7, (layer, n_out), jnp.float32, -b_l, b_l)
    b_out = jax.random.uniform(k8, (n_out,), jnp.float32, -b_l, b_l)

    ref = fcnet_ref(x, w_in, b_in, w1, b1, w2, b2, w_out, b_out)

    # 1) f32 matmul operands: tight check vs the pure-JAX reference.
    out_f32 = jax.block_until_ready(
        fcnet_forward(x, w_in, b_in, w1, b1, w2, b2, w_out, b_out,
                      param_dtype=jnp.float32))
    assert out_f32.shape == (batch,), f"bad shape {out_f32.shape}"
    assert jnp.allclose(out_f32, ref, atol=1e-5, rtol=1e-5), "f32 mismatch"

    # 2) default bf16 matmul operands (f32 accumulation): loosened tolerance.
    out_bf16 = jax.block_until_ready(
        fcnet_forward(x, w_in, b_in, w1, b1, w2, b2, w_out, b_out))
    assert out_bf16.shape == (batch,), f"bad shape {out_bf16.shape}"
    assert jnp.allclose(out_bf16, ref, atol=5e-2, rtol=5e-2), "bf16 mismatch"

    print("KERNEL_OK")
</pallas_src>

<mosaic_0001>
module attributes {stable_mosaic.version = 11 : i64} {
  func.func @fcnet_kernel(%arg0: i32, %arg1: memref<8x4xf32, #tpu.memory_space<vmem>>, %arg2: memref<4x32xf32, #tpu.memory_space<vmem>>, %arg3: memref<1x32xf32, #tpu.memory_space<vmem>>, %arg4: memref<3x32x32xf32, #tpu.memory_space<vmem>>, %arg5: memref<3x1x32xf32, #tpu.memory_space<vmem>>, %arg6: memref<3x32x32xf32, #tpu.memory_space<vmem>>, %arg7: memref<3x1x32xf32, #tpu.memory_space<vmem>>, %arg8: memref<32x1xf32, #tpu.memory_space<vmem>>, %arg9: memref<1x1xf32, #tpu.memory_space<vmem>>, %arg10: memref<8x1xf32, #tpu.memory_space<vmem>>) attributes {dimension_semantics = [#tpu.dimension_semantics<parallel>], iteration_bounds = array<i64: 1>, scalar_prefetch = 0 : i64, scratch_operands = 0 : i64, tpu.core_type = #tpu.core_type<tc>, window_params = [{transform_indices = @transform_0, window_bounds = array<i64: 8, 4>}, {pipeline_mode = #tpu.pipeline_mode<synchronous>, transform_indices = @transform_1, window_bounds = array<i64: 4, 32>}, {pipeline_mode = #tpu.pipeline_mode<synchronous>, transform_indices = @transform_2, window_bounds = array<i64: 1, 32>}, {pipeline_mode = #tpu.pipeline_mode<synchronous>, transform_indices = @transform_3, window_bounds = array<i64: 3, 32, 32>}, {pipeline_mode = #tpu.pipeline_mode<synchronous>, transform_indices = @transform_4, window_bounds = array<i64: 3, 1, 32>}, {pipeline_mode = #tpu.pipeline_mode<synchronous>, transform_indices = @transform_5, window_bounds = array<i64: 3, 32, 32>}, {pipeline_mode = #tpu.pipeline_mode<synchronous>, transform_indices = @transform_6, window_bounds = array<i64: 3, 1, 32>}, {pipeline_mode = #tpu.pipeline_mode<synchronous>, transform_indices = @transform_7, window_bounds = array<i64: 32, 1>}, {pipeline_mode = #tpu.pipeline_mode<synchronous>, transform_indices = @transform_8, window_bounds = array<i64: 1, 1>}, {transform_indices = @transform_9, window_bounds = array<i64: 8, 1>}]} {
    %c0 = arith.constant 0 : index
    %c0_0 = arith.constant 0 : index
    %0 = vector.load %arg1[%c0, %c0_0] : memref<8x4xf32, #tpu.memory_space<vmem>>, vector<8x4xf32>
    %c0_1 = arith.constant 0 : index
    %c0_2 = arith.constant 0 : index
    %1 = vector.load %arg2[%c0_1, %c0_2] : memref<4x32xf32, #tpu.memory_space<vmem>>, vector<4x32xf32>
    %cst = arith.constant dense<0.000000e+00> : vector<8x32xf32>
    %2 = tpu.matmul %0, %1, %cst {dimension_numbers = #tpu.dot_dimension_numbers<[1], [0], [0], [1], [0, 0, 1, 1], [], []>} : vector<8x4xf32>, vector<4x32xf32>, vector<8x32xf32> -> vector<8x32xf32>
    %c0_3 = arith.constant 0 : index
    %c0_4 = arith.constant 0 : index
    %3 = vector.load %arg3[%c0_3, %c0_4] : memref<1x32xf32, #tpu.memory_space<vmem>>, vector<1x32xf32>
    %4 = vector.broadcast %3 : vector<1x32xf32> to vector<8x32xf32>
    %5 = arith.addf %2, %4 : vector<8x32xf32>
    %c0_i32 = arith.constant 0 : i32
    %cst_5 = arith.constant 0.000000e+00 : f32
    %6 = vector.broadcast %cst_5 : f32 to vector<8x32xf32>
    %7 = arith.maximumf %5, %6 : vector<8x32xf32>
    %8 = arith.index_cast %c0_i32 : i32 to index
    %c0_6 = arith.constant 0 : index
    %c0_7 = arith.constant 0 : index
    %9 = vector.load %arg4[%8, %c0_6, %c0_7] : memref<3x32x32xf32, #tpu.memory_space<vmem>>, vector<1x32x32xf32>
    %10 = vector.shape_cast %9 : vector<1x32x32xf32> to vector<32x32xf32>
    %cst_8 = arith.constant dense<0.000000e+00> : vector<8x32xf32>
    %11 = tpu.matmul %7, %10, %cst_8 {dimension_numbers = #tpu.dot_dimension_numbers<[1], [0], [0], [1], [0, 0, 1, 1], [], []>} : vector<8x32xf32>, vector<32x32xf32>, vector<8x32xf32> -> vector<8x32xf32>
    %12 = arith.index_cast %c0_i32 : i32 to index
    %c0_9 = arith.constant 0 : index
    %c0_10 = arith.constant 0 : index
    %13 = vector.load %arg5[%12, %c0_9, %c0_10] : memref<3x1x32xf32, #tpu.memory_space<vmem>>, vector<1x1x32xf32>
    %14 = vector.shape_cast %13 : vector<1x1x32xf32> to vector<1x32xf32>
    %15 = vector.broadcast %14 : vector<1x32xf32> to vector<8x32xf32>
    %16 = arith.addf %11, %15 : vector<8x32xf32>
    %cst_11 = arith.constant 0.000000e+00 : f32
    %17 = vector.broadcast %cst_11 : f32 to vector<8x32xf32>
    %18 = arith.maximumf %16, %17 : vector<8x32xf32>
    %19 = arith.index_cast %c0_i32 : i32 to index
    %c0_12 = arith.constant 0 : index
    %c0_13 = arith.constant 0 : index
    %20 = vector.load %arg6[%19, %c0_12, %c0_13] : memref<3x32x32xf32, #tpu.memory_space<vmem>>, vector<1x32x32xf32>
    %21 = vector.shape_cast %20 : vector<1x32x32xf32> to vector<32x32xf32>
    %cst_14 = arith.constant dense<0.000000e+00> : vector<8x32xf32>
    %22 = tpu.matmul %18, %21, %cst_14 {dimension_numbers = #tpu.dot_dimension_numbers<[1], [0], [0], [1], [0, 0, 1, 1], [], []>} : vector<8x32xf32>, vector<32x32xf32>, vector<8x32xf32> -> vector<8x32xf32>
    %23 = arith.index_cast %c0_i32 : i32 to index
    %c0_15 = arith.constant 0 : index
    %c0_16 = arith.constant 0 : index
    %24 = vector.load %arg7[%23, %c0_15, %c0_16] : memref<3x1x32xf32, #tpu.memory_space<vmem>>, vector<1x1x32xf32>
    %25 = vector.shape_cast %24 : vector<1x1x32xf32> to vector<1x32xf32>
    %26 = vector.broadcast %25 : vector<1x32xf32> to vector<8x32xf32>
    %27 = arith.addf %22, %26 : vector<8x32xf32>
    %28 = arith.addf %5, %27 : vector<8x32xf32>
    %c1_i32 = arith.constant 1 : i32
    %cst_17 = arith.constant 0.000000e+00 : f32
    %29 = vector.broadcast %cst_17 : f32 to vector<8x32xf32>
    %30 = arith.maximumf %28, %29 : vector<8x32xf32>
    %31 = arith.index_cast %c1_i32 : i32 to index
    %c0_18 = arith.constant 0 : index
    %c0_19 = arith.constant 0 : index
    %32 = vector.load %arg4[%31, %c0_18, %c0_19] : memref<3x32x32xf32, #tpu.memory_space<vmem>>, vector<1x32x32xf32>
    %33 = vector.shape_cast %32 : vector<1x32x32xf32> to vector<32x32xf32>
    %cst_20 = arith.constant dense<0.000000e+00> : vector<8x32xf32>
    %34 = tpu.matmul %30, %33, %cst_20 {dimension_numbers = #tpu.dot_dimension_numbers<[1], [0], [0], [1], [0, 0, 1, 1], [], []>} : vector<8x32xf32>, vector<32x32xf32>, vector<8x32xf32> -> vector<8x32xf32>
    %35 = arith.index_cast %c1_i32 : i32 to index
    %c0_21 = arith.constant 0 : index
    %c0_22 = arith.constant 0 : index
    %36 = vector.load %arg5[%35, %c0_21, %c0_22] : memref<3x1x32xf32, #tpu.memory_space<vmem>>, vector<1x1x32xf32>
    %37 = vector.shape_cast %36 : vector<1x1x32xf32> to vector<1x32xf32>
    %38 = vector.broadcast %37 : vector<1x32xf32> to vector<8x32xf32>
    %39 = arith.addf %34, %38 : vector<8x32xf32>
    %cst_23 = arith.constant 0.000000e+00 : f32
    %40 = vector.broadcast %cst_23 : f32 to vector<8x32xf32>
    %41 = arith.maximumf %39, %40 : vector<8x32xf32>
    %42 = arith.index_cast %c1_i32 : i32 to index
    %c0_24 = arith.constant 0 : index
    %c0_25 = arith.constant 0 : index
    %43 = vector.load %arg6[%42, %c0_24, %c0_25] : memref<3x32x32xf32, #tpu.memory_space<vmem>>, vector<1x32x32xf32>
    %44 = vector.shape_cast %43 : vector<1x32x32xf32> to vector<32x32xf32>
    %cst_26 = arith.constant dense<0.000000e+00> : vector<8x32xf32>
    %45 = tpu.matmul %41, %44, %cst_26 {dimension_numbers = #tpu.dot_dimension_numbers<[1], [0], [0], [1], [0, 0, 1, 1], [], []>} : vector<8x32xf32>, vector<32x32xf32>, vector<8x32xf32> -> vector<8x32xf32>
    %46 = arith.index_cast %c1_i32 : i32 to index
    %c0_27 = arith.constant 0 : index
    %c0_28 = arith.constant 0 : index
    %47 = vector.load %arg7[%46, %c0_27, %c0_28] : memref<3x1x32xf32, #tpu.memory_space<vmem>>, vector<1x1x32xf32>
    %48 = vector.shape_cast %47 : vector<1x1x32xf32> to vector<1x32xf32>
    %49 = vector.broadcast %48 : vector<1x32xf32> to vector<8x32xf32>
    %50 = arith.addf %45, %49 : vector<8x32xf32>
    %51 = arith.addf %28, %50 : vector<8x32xf32>
    %c2_i32 = arith.constant 2 : i32
    %cst_29 = arith.constant 0.000000e+00 : f32
    %52 = vector.broadcast %cst_29 : f32 to vector<8x32xf32>
    %53 = arith.maximumf %51, %52 : vector<8x32xf32>
    %54 = arith.index_cast %c2_i32 : i32 to index
    %c0_30 = arith.constant 0 : index
    %c0_31 = arith.constant 0 : index
    %55 = vector.load %arg4[%54, %c0_30, %c0_31] : memref<3x32x32xf32, #tpu.memory_space<vmem>>, vector<1x32x32xf32>
    %56 = vector.shape_cast %55 : vector<1x32x32xf32> to vector<32x32xf32>
    %cst_32 = arith.constant dense<0.000000e+00> : vector<8x32xf32>
    %57 = tpu.matmul %53, %56, %cst_32 {dimension_numbers = #tpu.dot_dimension_numbers<[1], [0], [0], [1], [0, 0, 1, 1], [], []>} : vector<8x32xf32>, vector<32x32xf32>, vector<8x32xf32> -> vector<8x32xf32>
    %58 = arith.index_cast %c2_i32 : i32 to index
    %c0_33 = arith.constant 0 : index
    %c0_34 = arith.constant 0 : index
    %59 = vector.load %arg5[%58, %c0_33, %c0_34] : memref<3x1x32xf32, #tpu.memory_space<vmem>>, vector<1x1x32xf32>
    %60 = vector.shape_cast %59 : vector<1x1x32xf32> to vector<1x32xf32>
    %61 = vector.broadcast %60 : vector<1x32xf32> to vector<8x32xf32>
    %62 = arith.addf %57, %61 : vector<8x32xf32>
    %cst_35 = arith.constant 0.000000e+00 : f32
    %63 = vector.broadcast %cst_35 : f32 to vector<8x32xf32>
    %64 = arith.maximumf %62, %63 : vector<8x32xf32>
    %65 = arith.index_cast %c2_i32 : i32 to index
    %c0_36 = arith.constant 0 : index
    %c0_37 = arith.constant 0 : index
    %66 = vector.load %arg6[%65, %c0_36, %c0_37] : memref<3x32x32xf32, #tpu.memory_space<vmem>>, vector<1x32x32xf32>
    %67 = vector.shape_cast %66 : vector<1x32x32xf32> to vector<32x32xf32>
    %cst_38 = arith.constant dense<0.000000e+00> : vector<8x32xf32>
    %68 = tpu.matmul %64, %67, %cst_38 {dimension_numbers = #tpu.dot_dimension_numbers<[1], [0], [0], [1], [0, 0, 1, 1], [], []>} : vector<8x32xf32>, vector<32x32xf32>, vector<8x32xf32> -> vector<8x32xf32>
    %69 = arith.index_cast %c2_i32 : i32 to index
    %c0_39 = arith.constant 0 : index
    %c0_40 = arith.constant 0 : index
    %70 = vector.load %arg7[%69, %c0_39, %c0_40] : memref<3x1x32xf32, #tpu.memory_space<vmem>>, vector<1x1x32xf32>
    %71 = vector.shape_cast %70 : vector<1x1x32xf32> to vector<1x32xf32>
    %72 = vector.broadcast %71 : vector<1x32xf32> to vector<8x32xf32>
    %73 = arith.addf %68, %72 : vector<8x32xf32>
    %74 = arith.addf %51, %73 : vector<8x32xf32>
    %c3_i32 = arith.constant 3 : i32
    %cst_41 = arith.constant 0.000000e+00 : f32
    %75 = vector.broadcast %cst_41 : f32 to vector<8x32xf32>
    %76 = arith.maximumf %74, %75 : vector<8x32xf32>
    %c0_42 = arith.constant 0 : index
    %c0_43 = arith.constant 0 : index
    %77 = vector.load %arg8[%c0_42, %c0_43] : memref<32x1xf32, #tpu.memory_space<vmem>>, vector<32x1xf32>
    %cst_44 = arith.constant dense<0.000000e+00> : vector<8x1xf32>
    %78 = tpu.matmul %76, %77, %cst_44 {dimension_numbers = #tpu.dot_dimension_numbers<[1], [0], [0], [1], [0, 0, 1, 1], [], []>} : vector<8x32xf32>, vector<32x1xf32>, vector<8x1xf32> -> vector<8x1xf32>
    %c0_45 = arith.constant 0 : index
    %c0_46 = arith.constant 0 : index
    %79 = vector.load %arg9[%c0_45, %c0_46] : memref<1x1xf32, #tpu.memory_space<vmem>>, vector<1x1xf32>
    %80 = vector.broadcast %79 : vector<1x1xf32> to vector<8x1xf32>
    %81 = arith.addf %78, %80 : vector<8x1xf32>
    %c0_47 = arith.constant 0 : index
    %c0_48 = arith.constant 0 : index
    %82 = vector.load %arg10[%c0_47, %c0_48] : memref<8x1xf32, #tpu.memory_space<vmem>>, vector<8x1xf32>
    tpu.vector_store %arg10[%c0_47, %c0_48], %81 {strides = array<i32>} : memref<8x1xf32, #tpu.memory_space<vmem>>, vector<8x1xf32>,
    return
  }
  func.func @transform_0(%arg0: i32) -> (i32, i32) {
    %c0_i32 = arith.constant 0 : i32
    %c0_i32_0 = arith.constant 0 : i32
    return %arg0, %c0_i32 : i32, i32
  }
  func.func @transform_1(%arg0: i32) -> (i32, i32) {
    %c0_i32 = arith.constant 0 : i32
    %c0_i32_0 = arith.constant 0 : i32
    %c0_i32_1 = arith.constant 0 : i32
    return %c0_i32, %c0_i32_0 : i32, i32
  }
  func.func @transform_2(%arg0: i32) -> (i32, i32) {
    %c0_i32 = arith.constant 0 : i32
    %c0_i32_0 = arith.constant 0 : i32
    %c0_i32_1 = arith.constant 0 : i32
    return %c0_i32, %c0_i32_0 : i32, i32
  }
  func.func @transform_3(%arg0: i32) -> (i32, i32, i32) {
    %c0_i32 = arith.constant 0 : i32
    %c0_i32_0 = arith.constant 0 : i32
    %c0_i32_1 = arith.constant 0 : i32
    %c0_i32_2 = arith.constant 0 : i32
    return %c0_i32, %c0_i32_0, %c0_i32_1 : i32, i32, i32
  }
  func.func @transform_4(%arg0: i32) -> (i32, i32, i32) {
    %c0_i32 = arith.constant 0 : i32
    %c0_i32_0 = arith.constant 0 : i32
    %c0_i32_1 = arith.constant 0 : i32
    %c0_i32_2 = arith.constant 0 : i32
    return %c0_i32, %c0_i32_0, %c0_i32_1 : i32, i32, i32
  }
  func.func @transform_5(%arg0: i32) -> (i32, i32, i32) {
    %c0_i32 = arith.constant 0 : i32
    %c0_i32_0 = arith.constant 0 : i32
    %c0_i32_1 = arith.constant 0 : i32
    %c0_i32_2 = arith.constant 0 : i32
    return %c0_i32, %c0_i32_0, %c0_i32_1 : i32, i32, i32
  }
  func.func @transform_6(%arg0: i32) -> (i32, i32, i32) {
    %c0_i32 = arith.constant 0 : i32
    %c0_i32_0 = arith.constant 0 : i32
    %c0_i32_1 = arith.constant 0 : i32
    %c0_i32_2 = arith.constant 0 : i32
    return %c0_i32, %c0_i32_0, %c0_i32_1 : i32, i32, i32
  }
  func.func @transform_7(%arg0: i32) -> (i32, i32) {
    %c0_i32 = arith.constant 0 : i32
    %c0_i32_0 = arith.constant 0 : i32
    %c0_i32_1 = arith.constant 0 : i32
    return %c0_i32, %c0_i32_0 : i32, i32
  }
  func.func @transform_8(%arg0: i32) -> (i32, i32) {
    %c0_i32 = arith.constant 0 : i32
    %c0_i32_0 = arith.constant 0 : i32
    %c0_i32_1 = arith.constant 0 : i32
    return %c0_i32, %c0_i32_0 : i32, i32
  }
  func.func @transform_9(%arg0: i32) -> (i32, i32) {
    %c0_i32 = arith.constant 0 : i32
    %c0_i32_0 = arith.constant 0 : i32
    return %arg0, %c0_i32 : i32, i32
  }
}

</mosaic_0001>

<llo_original>
// kernel: tpu_custom_call.1
$region0: #{tpu_custom_call.1}
  #allocation0 [shape = 'u32[]', space=smem, size = 0x4, offset = 0x4, fixed_abs, tag = 'smem constant byte address 0x4 - core index']
  #allocation1 [shape = 'u32[144,128]{1,0:T(1,128)}', space=vmem, size = 0x12000, scoped, tag = 'internal scratch']
  #allocation2 [shape = 'f32[1,1]{1,0:T(1,128)S(1)}', space=vmem, size = 0x200, scoped, tag = 'scoped memory for tpu_custom_call.1']
  %s0 = inlined_call_operand.vmem [shape: f32[8,4], index: 0, kind: input, shape index: {}]
  %s1 = inlined_call_operand.vmem [shape: f32[4,32], index: 1, kind: input, shape index: {}]
  %s2 = inlined_call_operand.vmem [shape: f32[1,32], index: 2, kind: input, shape index: {}]
  %s3 = inlined_call_operand.hbm [shape: f32[3,32,32], index: 3, kind: input, shape index: {}]
  %s4 = inlined_call_operand.vmem [shape: f32[3,1,32], index: 4, kind: input, shape index: {}]
  %s5 = inlined_call_operand.hbm [shape: f32[3,32,32], index: 5, kind: input, shape index: {}]
  %s6 = inlined_call_operand.vmem [shape: f32[3,1,32], index: 6, kind: input, shape index: {}]
  %s7 = inlined_call_operand.vmem [shape: f32[32,1], index: 7, kind: input, shape index: {}]
  %s8 = inlined_call_operand.<no memory space> [shape: f32[1,1], index: 8, kind: input, shape index: {}]
  %s9 = inlined_call_operand.vmem [shape: f32[8,1], index: 9, kind: output, shape index: {}]
  %s10 = sld [smem:[#allocation0]]
  $region54: #{tpu_custom_call.1} parent=0
    _
  %s12 = ssub.s32 1, %s10
  %s13 = scalar_select 0, %s12, %s10
  %v14 = vstv %s8
  %15 = vst [vmem:[#allocation2] sm:$0x1] %v14
  $region1: #{tpu_custom_call.1} parent=0
    #allocation3 [shape = 'u8[49152]{0}', space=vmem, size = 0xc000, scoped, tag = 'input window, operand 3, single buffered']
    #allocation4 [shape = 's32[1]{0}', space=sflag, size = 0x4, scoped, tag = 'scoped memory for tpu_custom_call.1']
    #allocation5 [shape = 'u8[49152]{0}', space=vmem, size = 0xc000, scoped, tag = 'input window, operand 5, single buffered']
    #allocation6 [shape = 's32[1]{0}', space=sflag, size = 0x4, scoped, tag = 'scoped memory for tpu_custom_call.1']
    %16 = vsyncpa [#allocation4], 0
    %17 = vsyncpa [#allocation6], 0
    // Predicated region
    $region2: #{tpu_custom_call.1} parent=1 // pred_check
      _
    $region3: #{tpu_custom_call.1} parent=1 // pred_check_branch
      %19 = sbr.rel (0) target = $region5
    $region4: #{tpu_custom_call.1} parent=1 // pred_region
      _
    $region5: #{tpu_custom_call.1} parent=1 // pred_fallthru
      _
    // Predicated region
    $region6: #{tpu_custom_call.1} parent=1 // pred_check
      _
    $region7: #{tpu_custom_call.1} parent=1 // pred_check_branch
      %21 = sbr.rel (0) target = $region9
    $region8: #{tpu_custom_call.1} parent=1 // pred_region
      _
    $region9: #{tpu_custom_call.1} parent=1 // pred_fallthru
      _
    // Predicated region
    $region10: #{tpu_custom_call.1} parent=1 // pred_check
      _
    $region11: #{tpu_custom_call.1} parent=1 // pred_check_branch
      %23 = sbr.rel (0) target = $region13
    $region12: #{tpu_custom_call.1} parent=1 // pred_region
      _
    $region13: #{tpu_custom_call.1} parent=1 // pred_fallthru
      _
    // Predicated region
    $region14: #{tpu_custom_call.1} parent=1 // pred_check
      _
    $region15: #{tpu_custom_call.1} parent=1 // pred_check_branch
      %25 = sbr.rel (0) target = $region17
    $region16: #{tpu_custom_call.1} parent=1 // pred_region
      %s27 = ssub.s32 1536, 1536
      %28 = vsyncadd [#allocation4], %s27
      %s29 = sshll.u32 [#allocation3], 4
      %s30 = int_to_ptr.vmem [resolvable:$true] %s29
      %35 = dma.hbm_to_vmem [thread:$0]  %s3, 1536, %s30, [#allocation4], 128, 128, 8
    $region17: #{tpu_custom_call.1} parent=1 // pred_fallthru
      _
    // Predicated region
    $region18: #{tpu_custom_call.1} parent=1 // pred_check
      _
    $region19: #{tpu_custom_call.1} parent=1 // pred_check_branch
      %37 = sbr.rel (0) target = $region21
    $region20: #{tpu_custom_call.1} parent=1 // pred_region
      _
    $region21: #{tpu_custom_call.1} parent=1 // pred_fallthru
      _
    // Predicated region
    $region22: #{tpu_custom_call.1} parent=1 // pred_check
      _
    $region23: #{tpu_custom_call.1} parent=1 // pred_check_branch
      %39 = sbr.rel (0) target = $region25
    $region24: #{tpu_custom_call.1} parent=1 // pred_region
      %s41 = ssub.s32 1536, 1536
      %42 = vsyncadd [#allocation6], %s41
      %s43 = sshll.u32 [#allocation5], 4
      %s44 = int_to_ptr.vmem [resolvable:$true] %s43
      %49 = dma.hbm_to_vmem [thread:$0]  %s5, 1536, %s44, [#allocation6], 128, 128, 8
    $region25: #{tpu_custom_call.1} parent=1 // pred_fallthru
      _
    // Predicated region
    $region26: #{tpu_custom_call.1} parent=1 // pred_check
      _
    $region27: #{tpu_custom_call.1} parent=1 // pred_check_branch
      %51 = sbr.rel (0) target = $region29
    $region28: #{tpu_custom_call.1} parent=1 // pred_region
      _
    $region29: #{tpu_custom_call.1} parent=1 // pred_fallthru
      _
    // Predicated region
    $region30: #{tpu_custom_call.1} parent=1 // pred_check
      _
    $region31: #{tpu_custom_call.1} parent=1 // pred_check_branch
      %53 = sbr.rel (0) target = $region33
    $region32: #{tpu_custom_call.1} parent=1 // pred_region
      _
    $region33: #{tpu_custom_call.1} parent=1 // pred_fallthru
      _
    // Predicated region
    $region34: #{tpu_custom_call.1} parent=1 // pred_check
      _
    $region35: #{tpu_custom_call.1} parent=1 // pred_check_branch
      %55 = sbr.rel (0) target = $region37
    $region36: #{tpu_custom_call.1} parent=1 // pred_region
      _
    $region37: #{tpu_custom_call.1} parent=1 // pred_fallthru
      _
    // Predicated region
    $region38: #{tpu_custom_call.1} parent=1 // pred_check
      _
    $region39: #{tpu_custom_call.1} parent=1 // pred_check_branch
      %57 = sbr.rel (0) target = $region41
    $region40: #{tpu_custom_call.1} parent=1 // pred_region
      %58 = dma.done [#allocation4], 1536
    $region41: #{tpu_custom_call.1} parent=1 // pred_fallthru
      _
    // Predicated region
    $region42: #{tpu_custom_call.1} parent=1 // pred_check
      _
    $region43: #{tpu_custom_call.1} parent=1 // pred_check_branch
      %60 = sbr.rel (0) target = $region45
    $region44: #{tpu_custom_call.1} parent=1 // pred_region
      %61 = dma.done [#allocation6], 1536
    $region45: #{tpu_custom_call.1} parent=1 // pred_fallthru
      _
    %v62 = vld [vmem:[%s0] sm:$0xff]
    %v63 = vld [vmem:[%s1] sm:$0xf]
    %v64 = vld [vmem:[%s2] sm:$0x1]
    %v66 = vlaneseq
    %v67 = vshrl.u32 %v66, 7
    %v68 = vsub.s32 0, %v67
    %v69 = vrot.slane %v64, %v68
    %vm71 = vcmask 31744
    %v73 = vsel %vm71, %v62, 0
    %vm75 = vcmask 1043456
    %v77 = vsel %vm75, %v63, 0
    %79 = vmatprep.subr.mxu0 0.0
    %80 = vmatpush1.msra.mxu0 %v77
    %81 = vmatprep.subr.mxu0 0.0
    %82 = vmatpush1.msra.mxu0 0.0
    %83 = vmatprep.subr.mxu0 0.0
    %84 = vmatpush1.msra.mxu0 0.0
    %85 = vmatprep.subr.mxu0 0.0
    %86 = vmatpush1.msra.mxu0 0.0
    %87 = vmatprep.subr.mxu0 0.0
    %88 = vmatpush1.msra.mxu0 0.0
    %89 = vmatprep.subr.mxu0 0.0
    %90 = vmatpush1.msra.mxu0 0.0
    %91 = vmatprep.subr.mxu0 0.0
    %92 = vmatpush1.msra.mxu0 0.0
    %93 = vmatprep.subr.mxu0 0.0
    %94 = vmatpush1.msra.mxu0 0.0
    %95 = vmatprep.subr.mxu0 0.0
    %96 = vmatpush1.msra.mxu0 0.0
    %97 = vmatprep.subr.mxu0 0.0
    %98 = vmatpush1.msra.mxu0 0.0
    %99 = vmatprep.subr.mxu0 0.0
    %100 = vmatpush1.msra.mxu0 0.0
    %101 = vmatprep.subr.mxu0 0.0
    %102 = vmatpush1.msra.mxu0 0.0
    %103 = vmatprep.subr.mxu0 0.0
    %104 = vmatpush1.msra.mxu0 0.0
    %105 = vmatprep.subr.mxu0 0.0
    %106 = vmatpush1.msra.mxu0 0.0
    %107 = vmatprep.subr.mxu0 0.0
    %108 = vmatpush1.msra.mxu0 0.0
    %109 = vmatprep.subr.mxu0 0.0
    %110 = vmatpush1.msra.mxu0 0.0
    %111 = vmatprep.subr.mxu0 0.0
    %112 = vmatpush1.msra.mxu0 0.0
    %113 = vmatprep.subr.mxu0 0.0
    %114 = vmatpush1.msra.mxu0 0.0
    %115 = vmatprep.subr.mxu0 0.0
    %116 = vmatpush1.msra.mxu0 0.0
    %117 = vmatprep.subr.mxu0 0.0
    %118 = vmatpush1.msra.mxu0 0.0
    %119 = vmatprep.subr.mxu0 0.0
    %120 = vmatpush1.msra.mxu0 0.0
    %121 = vmatprep.subr.mxu0 0.0
    %122 = vmatpush1.msra.mxu0 0.0
    %123 = vmatprep.subr.mxu0 0.0
    %124 = vmatpush1.msra.mxu0 0.0
    %125 = vmatprep.subr.mxu0 0.0
    %126 = vmatpush1.msra.mxu0 0.0
    %127 = vmatprep.subr.mxu0 0.0
    %128 = vmatpush1.msra.mxu0 0.0
    %129 = vmatprep.subr.mxu0 0.0
    %130 = vmatpush1.msra.mxu0 0.0
    %131 = vmatprep.subr.mxu0 0.0
    %132 = vmatpush1.msra.mxu0 0.0
    %133 = vmatprep.subr.mxu0 0.0
    %134 = vmatpush1.msra.mxu0 0.0
    %135 = vmatprep.subr.mxu0 0.0
    %136 = vmatpush1.msra.mxu0 0.0
    %137 = vmatprep.subr.mxu0 0.0
    %138 = vmatpush1.msra.mxu0 0.0
    %139 = vmatprep.subr.mxu0 0.0
    %140 = vmatpush1.msra.mxu0 0.0
    %141 = vmatprep.subr.mxu0 0.0
    %142 = vmatpush1.msra.mxu0 0.0
    %143 = vmatprep.mubr.f32.mxu0 0.0
    %144 = vmatmul.mubr.f32.gmra.mrb[0].mxu0 %v73
    %v145 = vpop.f32.mrb[0].mxu0
    %v146 = vadd.f32 %v69, %v145
    %v147 = vpop.f32.mrb[0].mxu0
    %148 = vdwg.mxu0
    %v149 = vmax.f32 %v146, 0.0
    %v150 = vld [vmem:[#allocation3] sm:$0xff]
    %v151 = vld [vmem:[#allocation3 + $0x8] sm:$0xff]
    %v152 = vld [vmem:[#allocation3 + $0x10] sm:$0xff]
    %v153 = vld [vmem:[#allocation3 + $0x18] sm:$0xff]
    %v154 = vld [vmem:[%s4] sm:$0x1]
    %v156 = vlaneseq
    %v157 = vshrl.u32 %v156, 7
    %v158 = vsub.s32 0, %v157
    %v159 = vrot.slane %v154, %v158
    %vm161 = vcmask 261120
    %v163 = vsel %vm161, %v149, 0
    %165 = vmatprep.subr.mxu0 0.0
    %166 = vmatpush1.msra.mxu0 %v150
    %167 = vmatprep.subr.mxu0 0.0
    %168 = vmatpush1.msra.mxu0 %v151
    %169 = vmatprep.subr.mxu0 0.0
    %170 = vmatpush1.msra.mxu0 %v152
    %171 = vmatprep.subr.mxu0 0.0
    %172 = vmatpush1.msra.mxu0 %v153
    %173 = vmatprep.subr.mxu0 0.0
    %174 = vmatpush1.msra.mxu0 0.0
    %175 = vmatprep.subr.mxu0 0.0
    %176 = vmatpush1.msra.mxu0 0.0
    %177 = vmatprep.subr.mxu0 0.0
    %178 = vmatpush1.msra.mxu0 0.0
    %179 = vmatprep.subr.mxu0 0.0
    %180 = vmatpush1.msra.mxu0 0.0
    %181 = vmatprep.subr.mxu0 0.0
    %182 = vmatpush1.msra.mxu0 0.0
    %183 = vmatprep.subr.mxu0 0.0
    %184 = vmatpush1.msra.mxu0 0.0
    %185 = vmatprep.subr.mxu0 0.0
    %186 = vmatpush1.msra.mxu0 0.0
    %187 = vmatprep.subr.mxu0 0.0
    %188 = vmatpush1.msra.mxu0 0.0
    %189 = vmatprep.subr.mxu0 0.0
    %190 = vmatpush1.msra.mxu0 0.0
    %191 = vmatprep.subr.mxu0 0.0
    %192 = vmatpush1.msra.mxu0 0.0
    %193 = vmatprep.subr.mxu0 0.0
    %194 = vmatpush1.msra.mxu0 0.0
    %195 = vmatprep.subr.mxu0 0.0
    %196 = vmatpush1.msra.mxu0 0.0
    %197 = vmatprep.subr.mxu0 0.0
    %198 = vmatpush1.msra.mxu0 0.0
    %199 = vmatprep.subr.mxu0 0.0
    %200 = vmatpush1.msra.mxu0 0.0
    %201 = vmatprep.subr.mxu0 0.0
    %202 = vmatpush1.msra.mxu0 0.0
    %203 = vmatprep.subr.mxu0 0.0
    %204 = vmatpush1.msra.mxu0 0.0
    %205 = vmatprep.subr.mxu0 0.0
    %206 = vmatpush1.msra.mxu0 0.0
    %207 = vmatprep.subr.mxu0 0.0
    %208 = vmatpush1.msra.mxu0 0.0
    %209 = vmatprep.subr.mxu0 0.0
    %210 = vmatpush1.msra.mxu0 0.0
    %211 = vmatprep.subr.mxu0 0.0
    %212 = vmatpush1.msra.mxu0 0.0
    %213 = vmatprep.subr.mxu0 0.0
    %214 = vmatpush1.msra.mxu0 0.0
    %215 = vmatprep.subr.mxu0 0.0
    %216 = vmatpush1.msra.mxu0 0.0
    %217 = vmatprep.subr.mxu0 0.0
    %218 = vmatpush1.msra.mxu0 0.0
    %219 = vmatprep.subr.mxu0 0.0
    %220 = vmatpush1.msra.mxu0 0.0
    %221 = vmatprep.subr.mxu0 0.0
    %222 = vmatpush1.msra.mxu0 0.0
    %223 = vmatprep.subr.mxu0 0.0
    %224 = vmatpush1.msra.mxu0 0.0
    %225 = vmatprep.subr.mxu0 0.0
    %226 = vmatpush1.msra.mxu0 0.0
    %227 = vmatprep.subr.mxu0 0.0
    %228 = vmatpush1.msra.mxu0 0.0
    %229 = vmatprep.mubr.f32.mxu0 0.0
    %230 = vmatmul.mubr.f32.gmra.mrb[0].mxu0 %v163
    %v231 = vpop.f32.mrb[0].mxu0
    %v232 = vadd.f32 %v159, %v231
    %v233 = vpop.f32.mrb[0].mxu0
    %234 = vdwg.mxu0
    %v235 = vmax.f32 %v232, 0.0
    %v236 = vld [vmem:[#allocation5] sm:$0xff]
    %v237 = vld [vmem:[#allocation5 + $0x8] sm:$0xff]
    %v238 = vld [vmem:[#allocation5 + $0x10] sm:$0xff]
    %v239 = vld [vmem:[#allocation5 + $0x18] sm:$0xff]
    %v240 = vld [vmem:[%s6] sm:$0x1]
    %v242 = vlaneseq
    %v243 = vshrl.u32 %v242, 7
    %v244 = vsub.s32 0, %v243
    %v245 = vrot.slane %v240, %v244
    %v248 = vsel %vm161, %v235, 0
    %250 = vmatprep.subr.mxu0 0.0
    %251 = vmatpush1.msra.mxu0 %v236
    %252 = vmatprep.subr.mxu0 0.0
    %253 = vmatpush1.msra.mxu0 %v237
    %254 = vmatprep.subr.mxu0 0.0
    %255 = vmatpush1.msra.mxu0 %v238
    %256 = vmatprep.subr.mxu0 0.0
    %257 = vmatpush1.msra.mxu0 %v239
    %258 = vmatprep.subr.mxu0 0.0
    %259 = vmatpush1.msra.mxu0 0.0
    %260 = vmatprep.subr.mxu0 0.0
    %261 = vmatpush1.msra.mxu0 0.0
    %262 = vmatprep.subr.mxu0 0.0
    %263 = vmatpush1.msra.mxu0 0.0
    %264 = vmatprep.subr.mxu0 0.0
    %265 = vmatpush1.msra.mxu0 0.0
    %266 = vmatprep.subr.mxu0 0.0
    %267 = vmatpush1.msra.mxu0 0.0
    %268 = vmatprep.subr.mxu0 0.0
    %269 = vmatpush1.msra.mxu0 0.0
    %270 = vmatprep.subr.mxu0 0.0
    %271 = vmatpush1.msra.mxu0 0.0
    %272 = vmatprep.subr.mxu0 0.0
    %273 = vmatpush1.msra.mxu0 0.0
    %274 = vmatprep.subr.mxu0 0.0
    %275 = vmatpush1.msra.mxu0 0.0
    %276 = vmatprep.subr.mxu0 0.0
    %277 = vmatpush1.msra.mxu0 0.0
    %278 = vmatprep.subr.mxu0 0.0
    %279 = vmatpush1.msra.mxu0 0.0
    %280 = vmatprep.subr.mxu0 0.0
    %281 = vmatpush1.msra.mxu0 0.0
    %282 = vmatprep.subr.mxu0 0.0
    %283 = vmatpush1.msra.mxu0 0.0
    %284 = vmatprep.subr.mxu0 0.0
    %285 = vmatpush1.msra.mxu0 0.0
    %286 = vmatprep.subr.mxu0 0.0
    %287 = vmatpush1.msra.mxu0 0.0
    %288 = vmatprep.subr.mxu0 0.0
    %289 = vmatpush1.msra.mxu0 0.0
    %290 = vmatprep.subr.mxu0 0.0
    %291 = vmatpush1.msra.mxu0 0.0
    %292 = vmatprep.subr.mxu0 0.0
    %293 = vmatpush1.msra.mxu0 0.0
    %294 = vmatprep.subr.mxu0 0.0
    %295 = vmatpush1.msra.mxu0 0.0
    %296 = vmatprep.subr.mxu0 0.0
    %297 = vmatpush1.msra.mxu0 0.0
    %298 = vmatprep.subr.mxu0 0.0
    %299 = vmatpush1.msra.mxu0 0.0
    %300 = vmatprep.subr.mxu0 0.0
    %301 = vmatpush1.msra.mxu0 0.0
    %302 = vmatprep.subr.mxu0 0.0
    %303 = vmatpush1.msra.mxu0 0.0
    %304 = vmatprep.subr.mxu0 0.0
    %305 = vmatpush1.msra.mxu0 0.0
    %306 = vmatprep.subr.mxu0 0.0
    %307 = vmatpush1.msra.mxu0 0.0
    %308 = vmatprep.subr.mxu0 0.0
    %309 = vmatpush1.msra.mxu0 0.0
    %310 = vmatprep.subr.mxu0 0.0
    %311 = vmatpush1.msra.mxu0 0.0
    %312 = vmatprep.subr.mxu0 0.0
    %313 = vmatpush1.msra.mxu0 0.0
    %314 = vmatprep.mubr.f32.mxu0 0.0
    %315 = vmatmul.mubr.f32.gmra.mrb[0].mxu0 %v248
    %v316 = vpop.f32.mrb[0].mxu0
    %v317 = vadd.f32 %v245, %v316
    %v318 = vpop.f32.mrb[0].mxu0
    %319 = vdwg.mxu0
    %v320 = vadd.f32 %v146, %v317
    %v321 = vmax.f32 %v320, 0.0
    %s322 = scalar_lea.vmem [#allocation3], 32
    %v323 = vld [vmem:[%s322] sm:$0xff]
    %v324 = vld [vmem:[%s322 + $0x8] sm:$0xff]
    %v325 = vld [vmem:[%s322 + $0x10] sm:$0xff]
    %v326 = vld [vmem:[%s322 + $0x18] sm:$0xff]
    %s327 = scalar_lea.vmem %s4, 1
    %v328 = vld [vmem:[%s327] sm:$0x1]
    %v330 = vlaneseq
    %v331 = vshrl.u32 %v330, 7
    %v332 = vsub.s32 0, %v331
    %v333 = vrot.slane %v328, %v332
    %v336 = vsel %vm161, %v321, 0
    %338 = vmatprep.subr.mxu0 0.0
    %339 = vmatpush1.msra.mxu0 %v323
    %340 = vmatprep.subr.mxu0 0.0
    %341 = vmatpush1.msra.mxu0 %v324
    %342 = vmatprep.subr.mxu0 0.0
    %343 = vmatpush1.msra.mxu0 %v325
    %344 = vmatprep.subr.mxu0 0.0
    %345 = vmatpush1.msra.mxu0 %v326
    %346 = vmatprep.subr.mxu0 0.0
    %347 = vmatpush1.msra.mxu0 0.0
    %348 = vmatprep.subr.mxu0 0.0
    %349 = vmatpush1.msra.mxu0 0.0
    %350 = vmatprep.subr.mxu0 0.0
    %351 = vmatpush1.msra.mxu0 0.0
    %352 = vmatprep.subr.mxu0 0.0
    %353 = vmatpush1.msra.mxu0 0.0
    %354 = vmatprep.subr.mxu0 0.0
    %355 = vmatpush1.msra.mxu0 0.0
    %356 = vmatprep.subr.mxu0 0.0
    %357 = vmatpush1.msra.mxu0 0.0
    %358 = vmatprep.subr.mxu0 0.0
    %359 = vmatpush1.msra.mxu0 0.0
    %360 = vmatprep.subr.mxu0 0.0
    %361 = vmatpush1.msra.mxu0 0.0
    %362 = vmatprep.subr.mxu0 0.0
    %363 = vmatpush1.msra.mxu0 0.0
    %364 = vmatprep.subr.mxu0 0.0
    %365 = vmatpush1.msra.mxu0 0.0
    %366 = vmatprep.subr.mxu0 0.0
    %367 = vmatpush1.msra.mxu0 0.0
    %368 = vmatprep.subr.mxu0 0.0
    %369 = vmatpush1.msra.mxu0 0.0
    %370 = vmatprep.subr.mxu0 0.0
    %371 = vmatpush1.msra.mxu0 0.0
    %372 = vmatprep.subr.mxu0 0.0
    %373 = vmatpush1.msra.mxu0 0.0
    %374 = vmatprep.subr.mxu0 0.0
    %375 = vmatpush1.msra.mxu0 0.0
    %376 = vmatprep.subr.mxu0 0.0
    %377 = vmatpush1.msra.mxu0 0.0
    %378 = vmatprep.subr.mxu0 0.0
    %379 = vmatpush1.msra.mxu0 0.0
    %380 = vmatprep.subr.mxu0 0.0
    %381 = vmatpush1.msra.mxu0 0.0
    %382 = vmatprep.subr.mxu0 0.0
    %383 = vmatpush1.msra.mxu0 0.0
    %384 = vmatprep.subr.mxu0 0.0
    %385 = vmatpush1.msra.mxu0 0.0
    %386 = vmatprep.subr.mxu0 0.0
    %387 = vmatpush1.msra.mxu0 0.0
    %388 = vmatprep.subr.mxu0 0.0
    %389 = vmatpush1.msra.mxu0 0.0
    %390 = vmatprep.subr.mxu0 0.0
    %391 = vmatpush1.msra.mxu0 0.0
    %392 = vmatprep.subr.mxu0 0.0
    %393 = vmatpush1.msra.mxu0 0.0
    %394 = vmatprep.subr.mxu0 0.0
    %395 = vmatpush1.msra.mxu0 0.0
    %396 = vmatprep.subr.mxu0 0.0
    %397 = vmatpush1.msra.mxu0 0.0
    %398 = vmatprep.subr.mxu0 0.0
    %399 = vmatpush1.msra.mxu0 0.0
    %400 = vmatprep.subr.mxu0 0.0
    %401 = vmatpush1.msra.mxu0 0.0
    %402 = vmatprep.mubr.f32.mxu0 0.0
    %403 = vmatmul.mubr.f32.gmra.mrb[0].mxu0 %v336
    %v404 = vpop.f32.mrb[0].mxu0
    %v405 = vadd.f32 %v333, %v404
    %v406 = vpop.f32.mrb[0].mxu0
    %407 = vdwg.mxu0
    %v408 = vmax.f32 %v405, 0.0
    %s409 = scalar_lea.vmem [#allocation5], 32
    %v410 = vld [vmem:[%s409] sm:$0xff]
    %v411 = vld [vmem:[%s409 + $0x8] sm:$0xff]
    %v412 = vld [vmem:[%s409 + $0x10] sm:$0xff]
    %v413 = vld [vmem:[%s409 + $0x18] sm:$0xff]
    %s414 = scalar_lea.vmem %s6, 1
    %v415 = vld [vmem:[%s414] sm:$0x1]
    %v417 = vlaneseq
    %v418 = vshrl.u32 %v417, 7
    %v419 = vsub.s32 0, %v418
    %v420 = vrot.slane %v415, %v419
    %v423 = vsel %vm161, %v408, 0
    %425 = vmatprep.subr.mxu0 0.0
    %426 = vmatpush1.msra.mxu0 %v410
    %427 = vmatprep.subr.mxu0 0.0
    %428 = vmatpush1.msra.mxu0 %v411
    %429 = vmatprep.subr.mxu0 0.0
    %430 = vmatpush1.msra.mxu0 %v412
    %431 = vmatprep.subr.mxu0 0.0
    %432 = vmatpush1.msra.mxu0 %v413
    %433 = vmatprep.subr.mxu0 0.0
    %434 = vmatpush1.msra.mxu0 0.0
    %435 = vmatprep.subr.mxu0 0.0
    %436 = vmatpush1.msra.mxu0 0.0
    %437 = vmatprep.subr.mxu0 0.0
    %438 = vmatpush1.msra.mxu0 0.0
    %439 = vmatprep.subr.mxu0 0.0
    %440 = vmatpush1.msra.mxu0 0.0
    %441 = vmatprep.subr.mxu0 0.0
    %442 = vmatpush1.msra.mxu0 0.0
    %443 = vmatprep.subr.mxu0 0.0
    %444 = vmatpush1.msra.mxu0 0.0
    %445 = vmatprep.subr.mxu0 0.0
    %446 = vmatpush1.msra.mxu0 0.0
    %447 = vmatprep.subr.mxu0 0.0
    %448 = vmatpush1.msra.mxu0 0.0
    %449 = vmatprep.subr.mxu0 0.0
    %450 = vmatpush1.msra.mxu0 0.0
    %451 = vmatprep.subr.mxu0 0.0
    %452 = vmatpush1.msra.mxu0 0.0
    %453 = vmatprep.subr.mxu0 0.0
    %454 = vmatpush1.msra.mxu0 0.0
    %455 = vmatprep.subr.mxu0 0.0
    %456 = vmatpush1.msra.mxu0 0.0
    %457 = vmatprep.subr.mxu0 0.0
    %458 = vmatpush1.msra.mxu0 0.0
    %459 = vmatprep.subr.mxu0 0.0
    %460 = vmatpush1.msra.mxu0 0.0
    %461 = vmatprep.subr.mxu0 0.0
    %462 = vmatpush1.msra.mxu0 0.0
    %463 = vmatprep.subr.mxu0 0.0
    %464 = vmatpush1.msra.mxu0 0.0
    %465 = vmatprep.subr.mxu0 0.0
    %466 = vmatpush1.msra.mxu0 0.0
    %467 = vmatprep.subr.mxu0 0.0
    %468 = vmatpush1.msra.mxu0 0.0
    %469 = vmatprep.subr.mxu0 0.0
    %470 = vmatpush1.msra.mxu0 0.0
    %471 = vmatprep.subr.mxu0 0.0
    %472 = vmatpush1.msra.mxu0 0.0
    %473 = vmatprep.subr.mxu0 0.0
    %474 = vmatpush1.msra.mxu0 0.0
    %475 = vmatprep.subr.mxu0 0.0
    %476 = vmatpush1.msra.mxu0 0.0
    %477 = vmatprep.subr.mxu0 0.0
    %478 = vmatpush1.msra.mxu0 0.0
    %479 = vmatprep.subr.mxu0 0.0
    %480 = vmatpush1.msra.mxu0 0.0
    %481 = vmatprep.subr.mxu0 0.0
    %482 = vmatpush1.msra.mxu0 0.0
    %483 = vmatprep.subr.mxu0 0.0
    %484 = vmatpush1.msra.mxu0 0.0
    %485 = vmatprep.subr.mxu0 0.0
    %486 = vmatpush1.msra.mxu0 0.0
    %487 = vmatprep.subr.mxu0 0.0
    %488 = vmatpush1.msra.mxu0 0.0
    %489 = vmatprep.mubr.f32.mxu0 0.0
    %490 = vmatmul.mubr.f32.gmra.mrb[0].mxu0 %v423
    %v491 = vpop.f32.mrb[0].mxu0
    %v492 = vadd.f32 %v420, %v491
    %v493 = vpop.f32.mrb[0].mxu0
    %494 = vdwg.mxu0
    %v495 = vadd.f32 %v320, %v492
    %v496 = vmax.f32 %v495, 0.0
    %s497 = scalar_lea.vmem [#allocation3], 64
    %v498 = vld [vmem:[%s497] sm:$0xff]
    %v499 = vld [vmem:[%s497 + $0x8] sm:$0xff]
    %v500 = vld [vmem:[%s497 + $0x10] sm:$0xff]
    %v501 = vld [vmem:[%s497 + $0x18] sm:$0xff]
    %s502 = scalar_lea.vmem %s4, 2
    %v503 = vld [vmem:[%s502] sm:$0x1]
    %v505 = vlaneseq
    %v506 = vshrl.u32 %v505, 7
    %v507 = vsub.s32 0, %v506
    %v508 = vrot.slane %v503, %v507
    %v511 = vsel %vm161, %v496, 0
    %513 = vmatprep.subr.mxu0 0.0
    %514 = vmatpush1.msra.mxu0 %v498
    %515 = vmatprep.subr.mxu0 0.0
    %516 = vmatpush1.msra.mxu0 %v499
    %517 = vmatprep.subr.mxu0 0.0
    %518 = vmatpush1.msra.mxu0 %v500
    %519 = vmatprep.subr.mxu0 0.0
    %520 = vmatpush1.msra.mxu0 %v501
    %521 = vmatprep.subr.mxu0 0.0
    %522 = vmatpush1.msra.mxu0 0.0
    %523 = vmatprep.subr.mxu0 0.0
    %524 = vmatpush1.msra.mxu0 0.0
    %525 = vmatprep.subr.mxu0 0.0
    %526 = vmatpush1.msra.mxu0 0.0
    %527 = vmatprep.subr.mxu0 0.0
    %528 = vmatpush1.msra.mxu0 0.0
    %529 = vmatprep.subr.mxu0 0.0
    %530 = vmatpush1.msra.mxu0 0.0
    %531 = vmatprep.subr.mxu0 0.0
    %532 = vmatpush1.msra.mxu0 0.0
    %533 = vmatprep.subr.mxu0 0.0
    %534 = vmatpush1.msra.mxu0 0.0
    %535 = vmatprep.subr.mxu0 0.0
    %536 = vmatpush1.msra.mxu0 0.0
    %537 = vmatprep.subr.mxu0 0.0
    %538 = vmatpush1.msra.mxu0 0.0
    %539 = vmatprep.subr.mxu0 0.0
    %540 = vmatpush1.msra.mxu0 0.0
    %541 = vmatprep.subr.mxu0 0.0
    %542 = vmatpush1.msra.mxu0 0.0
    %543 = vmatprep.subr.mxu0 0.0
    %544 = vmatpush1.msra.mxu0 0.0
    %545 = vmatprep.subr.mxu0 0.0
    %546 = vmatpush1.msra.mxu0 0.0
    %547 = vmatprep.subr.mxu0 0.0
    %548 = vmatpush1.msra.mxu0 0.0
    %549 = vmatprep.subr.mxu0 0.0
    %550 = vmatpush1.msra.mxu0 0.0
    %551 = vmatprep.subr.mxu0 0.0
    %552 = vmatpush1.msra.mxu0 0.0
    %553 = vmatprep.subr.mxu0 0.0
    %554 = vmatpush1.msra.mxu0 0.0
    %555 = vmatprep.subr.mxu0 0.0
    %556 = vmatpush1.msra.mxu0 0.0
    %557 = vmatprep.subr.mxu0 0.0
    %558 = vmatpush1.msra.mxu0 0.0
    %559 = vmatprep.subr.mxu0 0.0
    %560 = vmatpush1.msra.mxu0 0.0
    %561 = vmatprep.subr.mxu0 0.0
    %562 = vmatpush1.msra.mxu0 0.0
    %563 = vmatprep.subr.mxu0 0.0
    %564 = vmatpush1.msra.mxu0 0.0
    %565 = vmatprep.subr.mxu0 0.0
    %566 = vmatpush1.msra.mxu0 0.0
    %567 = vmatprep.subr.mxu0 0.0
    %568 = vmatpush1.msra.mxu0 0.0
    %569 = vmatprep.subr.mxu0 0.0
    %570 = vmatpush1.msra.mxu0 0.0
    %571 = vmatprep.subr.mxu0 0.0
    %572 = vmatpush1.msra.mxu0 0.0
    %573 = vmatprep.subr.mxu0 0.0
    %574 = vmatpush1.msra.mxu0 0.0
    %575 = vmatprep.subr.mxu0 0.0
    %576 = vmatpush1.msra.mxu0 0.0
    %577 = vmatprep.mubr.f32.mxu0 0.0
    %578 = vmatmul.mubr.f32.gmra.mrb[0].mxu0 %v511
    %v579 = vpop.f32.mrb[0].mxu0
    %v580 = vadd.f32 %v508, %v579
    %v581 = vpop.f32.mrb[0].mxu0
    %582 = vdwg.mxu0
    %v583 = vmax.f32 %v580, 0.0
    %s584 = scalar_lea.vmem [#allocation5], 64
    %v585 = vld [vmem:[%s584] sm:$0xff]
    %v586 = vld [vmem:[%s584 + $0x8] sm:$0xff]
    %v587 = vld [vmem:[%s584 + $0x10] sm:$0xff]
    %v588 = vld [vmem:[%s584 + $0x18] sm:$0xff]
    %s589 = scalar_lea.vmem %s6, 2
    %v590 = vld [vmem:[%s589] sm:$0x1]
    %v592 = vlaneseq
    %v593 = vshrl.u32 %v592, 7
    %v594 = vsub.s32 0, %v593
    %v595 = vrot.slane %v590, %v594
    %v598 = vsel %vm161, %v583, 0
    %600 = vmatprep.subr.mxu0 0.0
    %601 = vmatpush1.msra.mxu0 %v585
    %602 = vmatprep.subr.mxu0 0.0
    %603 = vmatpush1.msra.mxu0 %v586
    %604 = vmatprep.subr.mxu0 0.0
    %605 = vmatpush1.msra.mxu0 %v587
    %606 = vmatprep.subr.mxu0 0.0
    %607 = vmatpush1.msra.mxu0 %v588
    %608 = vmatprep.subr.mxu0 0.0
    %609 = vmatpush1.msra.mxu0 0.0
    %610 = vmatprep.subr.mxu0 0.0
    %611 = vmatpush1.msra.mxu0 0.0
    %612 = vmatprep.subr.mxu0 0.0
    %613 = vmatpush1.msra.mxu0 0.0
    %614 = vmatprep.subr.mxu0 0.0
    %615 = vmatpush1.msra.mxu0 0.0
    %616 = vmatprep.subr.mxu0 0.0
    %617 = vmatpush1.msra.mxu0 0.0
    %618 = vmatprep.subr.mxu0 0.0
    %619 = vmatpush1.msra.mxu0 0.0
    %620 = vmatprep.subr.mxu0 0.0
    %621 = vmatpush1.msra.mxu0 0.0
    %622 = vmatprep.subr.mxu0 0.0
    %623 = vmatpush1.msra.mxu0 0.0
    %624 = vmatprep.subr.mxu0 0.0
    %625 = vmatpush1.msra.mxu0 0.0
    %626 = vmatprep.subr.mxu0 0.0
    %627 = vmatpush1.msra.mxu0 0.0
    %628 = vmatprep.subr.mxu0 0.0
    %629 = vmatpush1.msra.mxu0 0.0
    %630 = vmatprep.subr.mxu0 0.0
    %631 = vmatpush1.msra.mxu0 0.0
    %632 = vmatprep.subr.mxu0 0.0
    %633 = vmatpush1.msra.mxu0 0.0
    %634 = vmatprep.subr.mxu0 0.0
    %635 = vmatpush1.msra.mxu0 0.0
    %636 = vmatprep.subr.mxu0 0.0
    %637 = vmatpush1.msra.mxu0 0.0
    %638 = vmatprep.subr.mxu0 0.0
    %639 = vmatpush1.msra.mxu0 0.0
    %640 = vmatprep.subr.mxu0 0.0
    %641 = vmatpush1.msra.mxu0 0.0
    %642 = vmatprep.subr.mxu0 0.0
    %643 = vmatpush1.msra.mxu0 0.0
    %644 = vmatprep.subr.mxu0 0.0
    %645 = vmatpush1.msra.mxu0 0.0
    %646 = vmatprep.subr.mxu0 0.0
    %647 = vmatpush1.msra.mxu0 0.0
    %648 = vmatprep.subr.mxu0 0.0
    %649 = vmatpush1.msra.mxu0 0.0
    %650 = vmatprep.subr.mxu0 0.0
    %651 = vmatpush1.msra.mxu0 0.0
    %652 = vmatprep.subr.mxu0 0.0
    %653 = vmatpush1.msra.mxu0 0.0
    %654 = vmatprep.subr.mxu0 0.0
    %655 = vmatpush1.msra.mxu0 0.0
    %656 = vmatprep.subr.mxu0 0.0
    %657 = vmatpush1.msra.mxu0 0.0
    %658 = vmatprep.subr.mxu0 0.0
    %659 = vmatpush1.msra.mxu0 0.0
    %660 = vmatprep.subr.mxu0 0.0
    %661 = vmatpush1.msra.mxu0 0.0
    %662 = vmatprep.subr.mxu0 0.0
    %663 = vmatpush1.msra.mxu0 0.0
    %664 = vmatprep.mubr.f32.mxu0 0.0
    %665 = vmatmul.mubr.f32.gmra.mrb[0].mxu0 %v598
    %v666 = vpop.f32.mrb[0].mxu0
    %v667 = vadd.f32 %v595, %v666
    %v668 = vpop.f32.mrb[0].mxu0
    %669 = vdwg.mxu0
    %v670 = vadd.f32 %v495, %v667
    %v671 = vmax.f32 %v670, 0.0
    %v672 = vld [vmem:[%s7] sm:$0xff]
    %v673 = vld [vmem:[%s7 + $0x8] sm:$0xff]
    %v674 = vld [vmem:[%s7 + $0x10] sm:$0xff]
    %v675 = vld [vmem:[%s7 + $0x18] sm:$0xff]
    %v676 = vld [vmem:[#allocation2] sm:$0x1]
    %v678 = vlaneseq
    %v679 = vshrl.u32 %v678, 7
    %v680 = vsub.s32 0, %v679
    %v681 = vrot.slane %v676, %v680
    %v684 = vsel %vm161, %v671, 0
    %686 = vmatprep.subr.mxu0 0.0
    %687 = vmatpush1.msra.mxu0 %v672
    %688 = vmatprep.subr.mxu0 0.0
    %689 = vmatpush1.msra.mxu0 %v673
    %690 = vmatprep.subr.mxu0 0.0
    %691 = vmatpush1.msra.mxu0 %v674
    %692 = vmatprep.subr.mxu0 0.0
    %693 = vmatpush1.msra.mxu0 %v675
    %694 = vmatprep.subr.mxu0 0.0
    %695 = vmatpush1.msra.mxu0 0.0
    %696 = vmatprep.subr.mxu0 0.0
    %697 = vmatpush1.msra.mxu0 0.0
    %698 = vmatprep.subr.mxu0 0.0
    %699 = vmatpush1.msra.mxu0 0.0
    %700 = vmatprep.subr.mxu0 0.0
    %701 = vmatpush1.msra.mxu0 0.0
    %702 = vmatprep.subr.mxu0 0.0
    %703 = vmatpush1.msra.mxu0 0.0
    %704 = vmatprep.subr.mxu0 0.0
    %705 = vmatpush1.msra.mxu0 0.0
    %706 = vmatprep.subr.mxu0 0.0
    %707 = vmatpush1.msra.mxu0 0.0
    %708 = vmatprep.subr.mxu0 0.0
    %709 = vmatpush1.msra.mxu0 0.0
    %710 = vmatprep.subr.mxu0 0.0
    %711 = vmatpush1.msra.mxu0 0.0
    %712 = vmatprep.subr.mxu0 0.0
    %713 = vmatpush1.msra.mxu0 0.0
    %714 = vmatprep.subr.mxu0 0.0
    %715 = vmatpush1.msra.mxu0 0.0
    %716 = vmatprep.subr.mxu0 0.0
    %717 = vmatpush1.msra.mxu0 0.0
    %718 = vmatprep.subr.mxu0 0.0
    %719 = vmatpush1.msra.mxu0 0.0
    %720 = vmatprep.subr.mxu0 0.0
    %721 = vmatpush1.msra.mxu0 0.0
    %722 = vmatprep.subr.mxu0 0.0
    %723 = vmatpush1.msra.mxu0 0.0
    %724 = vmatprep.subr.mxu0 0.0
    %725 = vmatpush1.msra.mxu0 0.0
    %726 = vmatprep.subr.mxu0 0.0
    %727 = vmatpush1.msra.mxu0 0.0
    %728 = vmatprep.subr.mxu0 0.0
    %729 = vmatpush1.msra.mxu0 0.0
    %730 = vmatprep.subr.mxu0 0.0
    %731 = vmatpush1.msra.mxu0 0.0
    %732 = vmatprep.subr.mxu0 0.0
    %733 = vmatpush1.msra.mxu0 0.0
    %734 = vmatprep.subr.mxu0 0.0
    %735 = vmatpush1.msra.mxu0 0.0
    %736 = vmatprep.subr.mxu0 0.0
    %737 = vmatpush1.msra.mxu0 0.0
    %738 = vmatprep.subr.mxu0 0.0
    %739 = vmatpush1.msra.mxu0 0.0
    %740 = vmatprep.subr.mxu0 0.0
    %741 = vmatpush1.msra.mxu0 0.0
    %742 = vmatprep.subr.mxu0 0.0
    %743 = vmatpush1.msra.mxu0 0.0
    %744 = vmatprep.subr.mxu0 0.0
    %745 = vmatpush1.msra.mxu0 0.0
    %746 = vmatprep.subr.mxu0 0.0
    %747 = vmatpush1.msra.mxu0 0.0
    %748 = vmatprep.subr.mxu0 0.0
    %749 = vmatpush1.msra.mxu0 0.0
    %750 = vmatprep.mubr.f32.mxu0 0.0
    %751 = vmatmul.mubr.f32.gmra.mrb[0].mxu0 %v684
    %v752 = vpop.f32.mrb[0].mxu0
    %v753 = vadd.f32 %v681, %v752
    %v754 = vpop.f32.mrb[0].mxu0
    %755 = vdwg.mxu0
    %vm756 = vcmask 7168
    %757 = vst.msk [vmem:[%s9] sm:$0xff] %vm756, %v753
    // Predicated region
    $region46: #{tpu_custom_call.1} parent=1 // pred_check
      _
    $region47: #{tpu_custom_call.1} parent=1 // pred_check_branch
      %759 = sbr.rel (0) target = $region49
    $region48: #{tpu_custom_call.1} parent=1 // pred_region
      _
    $region49: #{tpu_custom_call.1} parent=1 // pred_fallthru
      _
    // Predicated region
    $region50: #{tpu_custom_call.1} parent=1 // pred_check
      _
    $region51: #{tpu_custom_call.1} parent=1 // pred_check_branch
      %761 = sbr.rel (0) target = $region53
    $region52: #{tpu_custom_call.1} parent=1 // pred_region
      _
    $region53: #{tpu_custom_call.1} parent=1 // pred_fallthru
      _
    %762 = vsyncpa [#allocation4], 1
    %763 = vsyncpa [#allocation6], 1

</llo_original>
